<compile_context>
chip_gen: v6e
topology: v6e:2x2x1
jax: 0.10.0
libtpu: 0.0.40
codegen_flags: <defaults>
</compile_context>

<pallas_src>
import functools
import math

import jax
import jax.numpy as jnp
from jax import lax
from jax.experimental import pallas as pl
from jax.experimental.pallas import tpu as pltpu


def _mha_kernel(x_ref, wq_ref, wk_ref, wv_ref, wo_ref, o_ref, acc_ref, *,
                compute_dtype, approx_recip):
    # Blocks per grid step (b, h):
    #   x_ref : [1, n, d]        (same block across the head axis -> resident)
    #   wq/wk/wv_ref : [1, d_head, d]   (this head's projection rows)
    #   wo_ref: [1, d, d_head]          (this head's output-projection columns)
    #   o_ref : [1, n, d]        (same block across heads -> written once)
    #   acc_ref: VMEM scratch [n, d] f32 accumulator across heads.
    h = pl.program_id(1)

    @pl.when(h == 0)
    def _():
        acc_ref[...] = jnp.zeros_like(acc_ref)

    x = x_ref[0]                         # [n, d], compute dtype
    wq = wq_ref[0]                       # [d_head, d] (scale pre-folded)
    wk = wk_ref[0]
    wv = wv_ref[0]
    wo = wo_ref[0]                       # [d, d_head]

    # y = x @ W_h.T == contract dim 1 of x with dim 1 of W_h (no .T materialized).
    def _proj(w):
        return lax.dot_general(x, w, (((1,), (1,)), ((), ())),
                               preferred_element_type=jnp.float32)   # [n, d_head]

    q = _proj(wq)                        # already scaled by 1/sqrt(d_head)
    k = _proj(wk)
    v = _proj(wv)

    # Scores for this head: q @ k.T via contraction over d_head -> [n, n] f32.
    # (d_head-wide contraction underutilizes the 256-wide MXU on v6e/v7x; the
    #  full-d projection matmuls dominate the FLOP mix.)
    s = lax.dot_general(q.astype(compute_dtype), k.astype(compute_dtype),
                        (((1,), (1,)), ((), ())),
                        preferred_element_type=jnp.float32)

    m = jnp.max(s, axis=-1, keepdims=True)          # stable softmax, f32
    p = jnp.exp(s - m)
    l = jnp.sum(p, axis=-1, keepdims=True)          # [n, 1]

    # Unnormalized p @ v, then one deferred normalization on the small ctx.
    ctx = jnp.dot(p.astype(compute_dtype), v.astype(compute_dtype),
                  preferred_element_type=jnp.float32)   # [n, d_head] f32
    ctx = ctx * pl.reciprocal(l, approx=approx_recip)

    # Output-projection contribution of this head: ctx @ Wo[:, h*dh:(h+1)*dh].T
    # == contract ctx dim 1 with wo dim 1 -> [n, d], accumulated in f32.
    acc_ref[...] += lax.dot_general(ctx.astype(compute_dtype), wo,
                                    (((1,), (1,)), ((), ())),
                                    preferred_element_type=jnp.float32)

    @pl.when(h == pl.num_programs(1) - 1)
    def _():
        o_ref[0] = acc_ref[...].astype(o_ref.dtype)


def multi_head_attention(x, wq, wk, wv, wo, num_heads, mask=None, *,
                         compute_dtype=jnp.bfloat16, vmem_limit_bytes=None):
    """Fused Pallas MHA forward.

    `mask` is accepted but unused: the reference module's forward computes
    `mask.unsqueeze(1)` but never applies it to the attention scores, so the
    effective semantics are unmasked attention.
    """
    del mask  # Intentionally ignored to match the reference forward exactly.
    bs, n, d = x.shape
    assert d % num_heads == 0, "dim must be divisible by num_heads"
    d_head = d // num_heads
    out_dtype = x.dtype
    is_f32_path = jnp.dtype(compute_dtype) == jnp.dtype(jnp.float32)

    # One-time wrapper-side weight prep (outside the kernel, runs once):
    #   * fold 1/sqrt(d_head) into Wq,
    #   * cast MXU operands to compute_dtype,
    #   * reshape to per-head layouts so the kernel never transposes.
    scale = 1.0 / math.sqrt(d_head)
    xc = x.astype(compute_dtype)
    wq_r = (wq * scale).astype(compute_dtype).reshape(num_heads, d_head, d)
    wk_r = wk.astype(compute_dtype).reshape(num_heads, d_head, d)
    wv_r = wv.astype(compute_dtype).reshape(num_heads, d_head, d)
    wo_r = jnp.transpose(
        wo.astype(compute_dtype).reshape(d, num_heads, d_head), (1, 0, 2))

    kernel = functools.partial(_mha_kernel, compute_dtype=compute_dtype,
                               approx_recip=not is_f32_path)

    item_c = jnp.dtype(compute_dtype).itemsize
    item_o = jnp.dtype(out_dtype).itemsize

    # Per-step VMEM footprint (double-buffered blocks + f32 intermediates).
    if vmem_limit_bytes is None:
        est = (2 * n * d * item_c                 # x block (double-buffered)
               + 2 * n * d * item_o               # out block
               + 2 * 4 * d * d_head * item_c      # per-head weight blocks
               + n * d * 4                        # acc scratch
               + 3 * n * d_head * 4               # q, k, v (f32)
               + 2 * n * n * 4                    # s, p (f32)
               + n * n * item_c                   # p cast for PV matmul
               + n * d_head * 4)                  # ctx
        vmem_limit_bytes = min(max(2 * est, 32 * 1024 * 1024), 64 * 1024 * 1024)

    flops = bs * (8 * n * d * d + 4 * n * n * d)  # 4 projections + QK^T + PV
    transcendentals = bs * num_heads * n * n      # exp
    bytes_accessed = (bs * n * d * item_c         # x
                      + 4 * d * d * item_c        # weights
                      + bs * n * d * item_o)      # out
    cost = pl.CostEstimate(flops=flops, transcendentals=transcendentals,
                           bytes_accessed=bytes_accessed)

    return pl.pallas_call(
        kernel,
        out_shape=jax.ShapeDtypeStruct((bs, n, d), out_dtype),
        grid_spec=pltpu.PrefetchScalarGridSpec(
            num_scalar_prefetch=0,
            grid=(bs, num_heads),                 # heads (reduction) last
            in_specs=[
                pl.BlockSpec((1, n, d), lambda b, h: (b, 0, 0)),        # x
                pl.BlockSpec((1, d_head, d), lambda b, h: (h, 0, 0)),   # Wq_h
                pl.BlockSpec((1, d_head, d), lambda b, h: (h, 0, 0)),   # Wk_h
                pl.BlockSpec((1, d_head, d), lambda b, h: (h, 0, 0)),   # Wv_h
                pl.BlockSpec((1, d, d_head), lambda b, h: (h, 0, 0)),   # Wo_h
            ],
            out_specs=pl.BlockSpec((1, n, d), lambda b, h: (b, 0, 0)),
            scratch_shapes=[pltpu.VMEM((n, d), jnp.float32)],
        ),
        compiler_params=pltpu.CompilerParams(
            dimension_semantics=("parallel", "arbitrary"),
            vmem_limit_bytes=vmem_limit_bytes),
        cost_estimate=cost,
    )(xc, wq_r, wk_r, wv_r, wo_r)


def _reference(x, wq, wk, wv, wo, num_heads):
    """Pure-JAX reference replicating the PyTorch forward (eval mode, f32)."""
    bs, n, d = x.shape
    dh = d // num_heads
    q = x @ wq.T
    k = x @ wk.T
    v = x @ wv.T

    def split(t):  # transpose_qkv
        return t.reshape(bs, n, num_heads, dh).transpose(0, 2, 1, 3).reshape(
            bs * num_heads, n, dh)

    q, k, v = split(q), split(k), split(v)
    s = jnp.einsum("bqd,bkd->bqk", q, k) / math.sqrt(dh)
    p = jax.nn.softmax(s, axis=-1)
    o = jnp.einsum("bqk,bkd->bqd", p, v)
    # transpose_o: inverse of transpose_qkv
    o = o.reshape(bs, num_heads, n, dh).transpose(0, 2, 1, 3).reshape(bs, n, d)
    return o @ wo.T


if __name__ == "__main__":
    bs, n, d, num_heads = 2, 8, 32, 4

    key = jax.random.PRNGKey(0)
    kx, kq, kk, kv, ko = jax.random.split(key, 5)
    x = jax.random.normal(kx, (bs, n, d), dtype=jnp.float32)
    # Deterministic nn.Linear-style weights [out, in]
    wscale = 1.0 / math.sqrt(d)
    wq = jax.random.normal(kq, (d, d), dtype=jnp.float32) * wscale
    wk = jax.random.normal(kk, (d, d), dtype=jnp.float32) * wscale
    wv = jax.random.normal(kv, (d, d), dtype=jnp.float32) * wscale
    wo = jax.random.normal(ko, (d, d), dtype=jnp.float32) * wscale

    ref = _reference(x, wq, wk, wv, wo, num_heads)

    # f32 compute path: exact module semantics, tight tolerance.
    out_f32 = multi_head_attention(x, wq, wk, wv, wo, num_heads, mask=None,
                                   compute_dtype=jnp.float32)
    out_f32 = jax.block_until_ready(out_f32)
    assert out_f32.shape == (bs, n, d)
    assert jnp.allclose(out_f32, ref, atol=1e-4, rtol=1e-4), "f32 mismatch vs reference"

    # Default bf16-MXU path: same math, bf16 operand quantization on matmuls only.
    out_bf16 = multi_head_attention(x, wq, wk, wv, wo, num_heads, mask=None)
    out_bf16 = jax.block_until_ready(out_bf16)
    assert out_bf16.shape == (bs, n, d)
    assert jnp.allclose(out_bf16, ref, atol=5e-2, rtol=5e-2), "bf16 mismatch vs reference"

    print("KERNEL_OK")
</pallas_src>

<mosaic_0001>
module attributes {stable_mosaic.version = 11 : i64} {
  func.func @_mha_kernel(%arg0: i32, %arg1: i32, %arg2: memref<1x8x32xf32, #tpu.memory_space<vmem>>, %arg3: memref<1x8x32xf32, #tpu.memory_space<vmem>>, %arg4: memref<1x8x32xf32, #tpu.memory_space<vmem>>, %arg5: memref<1x8x32xf32, #tpu.memory_space<vmem>>, %arg6: memref<1x32x8xf32, #tpu.memory_space<vmem>>, %arg7: memref<1x8x32xf32, #tpu.memory_space<vmem>>, %arg8: memref<8x32xf32, #tpu.memory_space<vmem>>) attributes {dimension_semantics = [#tpu.dimension_semantics<parallel>, #tpu.dimension_semantics<arbitrary>], iteration_bounds = array<i64: 2, 4>, scalar_prefetch = 0 : i64, scratch_operands = 1 : i64, tpu.core_type = #tpu.core_type<tc>, window_params = [{transform_indices = @transform_0, window_bounds = array<i64: 1, 8, 32>}, {transform_indices = @transform_1, window_bounds = array<i64: 1, 8, 32>}, {transform_indices = @transform_2, window_bounds = array<i64: 1, 8, 32>}, {transform_indices = @transform_3, window_bounds = array<i64: 1, 8, 32>}, {transform_indices = @transform_4, window_bounds = array<i64: 1, 32, 8>}, {transform_indices = @transform_5, window_bounds = array<i64: 1, 8, 32>}]} {
    %c0_i32 = arith.constant 0 : i32
    %0 = arith.cmpi eq, %arg1, %c0_i32 : i32
    %1 = arith.extui %0 : i1 to i32
    %c0_i32_0 = arith.constant 0 : i32
    %2 = arith.cmpi ne, %1, %c0_i32_0 : i32
    scf.if %2 {
      %cst_27 = arith.constant 0.000000e+00 : f32
      %35 = vector.broadcast %cst_27 : f32 to vector<8x32xf32>
      %c0_28 = arith.constant 0 : index
      %c0_29 = arith.constant 0 : index
      %36 = vector.load %arg8[%c0_28, %c0_29] : memref<8x32xf32, #tpu.memory_space<vmem>>, vector<8x32xf32>
      tpu.vector_store %arg8[%c0_28, %c0_29], %35 {strides = array<i32>} : memref<8x32xf32, #tpu.memory_space<vmem>>, vector<8x32xf32>,
    } else {
    }
    %c0 = arith.constant 0 : index
    %c0_1 = arith.constant 0 : index
    %c0_2 = arith.constant 0 : index
    %3 = vector.load %arg2[%c0, %c0_1, %c0_2] : memref<1x8x32xf32, #tpu.memory_space<vmem>>, vector<1x8x32xf32>
    %4 = vector.shape_cast %3 : vector<1x8x32xf32> to vector<8x32xf32>
    %c0_3 = arith.constant 0 : index
    %c0_4 = arith.constant 0 : index
    %c0_5 = arith.constant 0 : index
    %5 = vector.load %arg3[%c0_3, %c0_4, %c0_5] : memref<1x8x32xf32, #tpu.memory_space<vmem>>, vector<1x8x32xf32>
    %6 = vector.shape_cast %5 : vector<1x8x32xf32> to vector<8x32xf32>
    %c0_6 = arith.constant 0 : index
    %c0_7 = arith.constant 0 : index
    %c0_8 = arith.constant 0 : index
    %7 = vector.load %arg4[%c0_6, %c0_7, %c0_8] : memref<1x8x32xf32, #tpu.memory_space<vmem>>, vector<1x8x32xf32>
    %8 = vector.shape_cast %7 : vector<1x8x32xf32> to vector<8x32xf32>
    %c0_9 = arith.constant 0 : index
    %c0_10 = arith.constant 0 : index
    %c0_11 = arith.constant 0 : index
    %9 = vector.load %arg5[%c0_9, %c0_10, %c0_11] : memref<1x8x32xf32, #tpu.memory_space<vmem>>, vector<1x8x32xf32>
    %10 = vector.shape_cast %9 : vector<1x8x32xf32> to vector<8x32xf32>
    %c0_12 = arith.constant 0 : index
    %c0_13 = arith.constant 0 : index
    %c0_14 = arith.constant 0 : index
    %11 = vector.load %arg6[%c0_12, %c0_13, %c0_14] : memref<1x32x8xf32, #tpu.memory_space<vmem>>, vector<1x32x8xf32>
    %12 = vector.shape_cast %11 : vector<1x32x8xf32> to vector<32x8xf32>
    %cst = arith.constant dense<0.000000e+00> : vector<8x8xf32>
    %13 = tpu.matmul %4, %6, %cst {dimension_numbers = #tpu.dot_dimension_numbers<[1], [1], [0], [0], [0, 0, 1, 0], [], []>} : vector<8x32xf32>, vector<8x32xf32>, vector<8x8xf32> -> vector<8x8xf32>
    %cst_15 = arith.constant dense<0.000000e+00> : vector<8x8xf32>
    %14 = tpu.matmul %4, %8, %cst_15 {dimension_numbers = #tpu.dot_dimension_numbers<[1], [1], [0], [0], [0, 0, 1, 0], [], []>} : vector<8x32xf32>, vector<8x32xf32>, vector<8x8xf32> -> vector<8x8xf32>
    %cst_16 = arith.constant dense<0.000000e+00> : vector<8x8xf32>
    %15 = tpu.matmul %4, %10, %cst_16 {dimension_numbers = #tpu.dot_dimension_numbers<[1], [1], [0], [0], [0, 0, 1, 0], [], []>} : vector<8x32xf32>, vector<8x32xf32>, vector<8x8xf32> -> vector<8x8xf32>
    %cst_17 = arith.constant dense<0.000000e+00> : vector<8x8xf32>
    %16 = tpu.matmul %13, %14, %cst_17 {dimension_numbers = #tpu.dot_dimension_numbers<[1], [1], [0], [0], [0, 0, 1, 0], [], []>} : vector<8x8xf32>, vector<8x8xf32>, vector<8x8xf32> -> vector<8x8xf32>
    %cst_18 = arith.constant dense<0xFF800000> : vector<8xf32>
    %17 = vector.multi_reduction <maximumf>, %16, %cst_18 [1] : vector<8x8xf32> to vector<8xf32>
    %18 = vector.shape_cast %17 : vector<8xf32> to vector<8x1xf32>
    %19 = vector.broadcast %18 : vector<8x1xf32> to vector<8x8xf32>
    %20 = arith.subf %16, %19 : vector<8x8xf32>
    %21 = math.exp %20 : vector<8x8xf32>
    %cst_19 = arith.constant dense<0.000000e+00> : vector<8xf32>
    %22 = vector.multi_reduction <add>, %21, %cst_19 [1] : vector<8x8xf32> to vector<8xf32>
    %23 = vector.shape_cast %22 : vector<8xf32> to vector<8x1xf32>
    %cst_20 = arith.constant dense<0.000000e+00> : vector<8x8xf32>
    %24 = tpu.matmul %21, %15, %cst_20 {dimension_numbers = #tpu.dot_dimension_numbers<[1], [0], [0], [1], [0, 0, 1, 1], [], []>} : vector<8x8xf32>, vector<8x8xf32>, vector<8x8xf32> -> vector<8x8xf32>
    %25 = tpu.reciprocal %23 : vector<8x1xf32> -> vector<8x1xf32>
    %26 = vector.broadcast %25 : vector<8x1xf32> to vector<8x8xf32>
    %27 = arith.mulf %24, %26 : vector<8x8xf32>
    %c0_21 = arith.constant 0 : index
    %c0_22 = arith.constant 0 : index
    %28 = vector.load %arg8[%c0_21, %c0_22] : memref<8x32xf32, #tpu.memory_space<vmem>>, vector<8x32xf32>
    %cst_23 = arith.constant dense<0.000000e+00> : vector<8x32xf32>
    %29 = tpu.matmul %27, %12, %cst_23 {dimension_numbers = #tpu.dot_dimension_numbers<[1], [1], [0], [0], [0, 0, 1, 0], [], []>} : vector<8x8xf32>, vector<32x8xf32>, vector<8x32xf32> -> vector<8x32xf32>
    %30 = arith.addf %28, %29 : vector<8x32xf32>
    %c0_24 = arith.constant 0 : index
    %c0_25 = arith.constant 0 : index
    %31 = vector.load %arg8[%c0_24, %c0_25] : memref<8x32xf32, #tpu.memory_space<vmem>>, vector<8x32xf32>
    tpu.vector_store %arg8[%c0_24, %c0_25], %30 {strides = array<i32>} : memref<8x32xf32, #tpu.memory_space<vmem>>, vector<8x32xf32>,
    %c3_i32 = arith.constant 3 : i32
    %32 = arith.cmpi eq, %arg1, %c3_i32 : i32
    %33 = arith.extui %32 : i1 to i32
    %c0_i32_26 = arith.constant 0 : i32
    %34 = arith.cmpi ne, %33, %c0_i32_26 : i32
    scf.if %34 {
      %c0_27 = arith.constant 0 : index
      %c0_28 = arith.constant 0 : index
      %35 = vector.load %arg8[%c0_27, %c0_28] : memref<8x32xf32, #tpu.memory_space<vmem>>, vector<8x32xf32>
      %c0_29 = arith.constant 0 : index
      %c0_30 = arith.constant 0 : index
      %c0_31 = arith.constant 0 : index
      %36 = vector.load %arg7[%c0_29, %c0_30, %c0_31] : memref<1x8x32xf32, #tpu.memory_space<vmem>>, vector<1x8x32xf32>
      %37 = vector.shape_cast %36 : vector<1x8x32xf32> to vector<8x32xf32>
      %38 = vector.shape_cast %35 : vector<8x32xf32> to vector<1x8x32xf32>
      tpu.vector_store %arg7[%c0_29, %c0_30, %c0_31], %38 {strides = array<i32>} : memref<1x8x32xf32, #tpu.memory_space<vmem>>, vector<1x8x32xf32>,
    } else {
    }
    return
  }
  func.func @transform_0(%arg0: i32, %arg1: i32) -> (i32, i32, i32) {
    %c0_i32 = arith.constant 0 : i32
    %c0_i32_0 = arith.constant 0 : i32
    %c0_i32_1 = arith.constant 0 : i32
    return %arg0, %c0_i32, %c0_i32_0 : i32, i32, i32
  }
  func.func @transform_1(%arg0: i32, %arg1: i32) -> (i32, i32, i32) {
    %c0_i32 = arith.constant 0 : i32
    %c0_i32_0 = arith.constant 0 : i32
    %c0_i32_1 = arith.constant 0 : i32
    return %arg1, %c0_i32, %c0_i32_0 : i32, i32, i32
  }
  func.func @transform_2(%arg0: i32, %arg1: i32) -> (i32, i32, i32) {
    %c0_i32 = arith.constant 0 : i32
    %c0_i32_0 = arith.constant 0 : i32
    %c0_i32_1 = arith.constant 0 : i32
    return %arg1, %c0_i32, %c0_i32_0 : i32, i32, i32
  }
  func.func @transform_3(%arg0: i32, %arg1: i32) -> (i32, i32, i32) {
    %c0_i32 = arith.constant 0 : i32
    %c0_i32_0 = arith.constant 0 : i32
    %c0_i32_1 = arith.constant 0 : i32
    return %arg1, %c0_i32, %c0_i32_0 : i32, i32, i32
  }
  func.func @transform_4(%arg0: i32, %arg1: i32) -> (i32, i32, i32) {
    %c0_i32 = arith.constant 0 : i32
    %c0_i32_0 = arith.constant 0 : i32
    %c0_i32_1 = arith.constant 0 : i32
    return %arg1, %c0_i32, %c0_i32_0 : i32, i32, i32
  }
  func.func @transform_5(%arg0: i32, %arg1: i32) -> (i32, i32, i32) {
    %c0_i32 = arith.constant 0 : i32
    %c0_i32_0 = arith.constant 0 : i32
    %c0_i32_1 = arith.constant 0 : i32
    return %arg0, %c0_i32, %c0_i32_0 : i32, i32, i32
  }
}

</mosaic_0001>

<llo_original>
// kernel: tpu_custom_call.1
$region0: #{tpu_custom_call.1}
  #allocation0 [shape = 'u32[]', space=smem, size = 0x4, offset = 0x4, fixed_abs, tag = 'smem constant byte address 0x4 - core index']
  #allocation1 [shape = 'u32[144,128]{1,0:T(1,128)}', space=vmem, size = 0x12000, scoped, tag = 'internal scratch']
  #allocation2 [shape = 'f32[8,32]{1,0:T(8,128)}', space=vmem, size = 0x1000, scoped, tag = 'scratch operand']
  %s0 = inlined_call_operand.vmem [shape: f32[2,8,32], index: 0, kind: input, shape index: {}]
  %s1 = inlined_call_operand.vmem [shape: f32[4,8,32], index: 1, kind: input, shape index: {}]
  %s2 = inlined_call_operand.vmem [shape: f32[4,8,32], index: 2, kind: input, shape index: {}]
  %s3 = inlined_call_operand.vmem [shape: f32[4,8,32], index: 3, kind: input, shape index: {}]
  %s4 = inlined_call_operand.vmem [shape: f32[4,32,8], index: 4, kind: input, shape index: {}]
  %s5 = inlined_call_operand.hbm [shape: f32[2,8,32], index: 5, kind: output, shape index: {}]
  %s6 = sld [smem:[#allocation0]]
  $region61: #{tpu_custom_call.1} parent=0
    _
  %s8 = ssub.s32 1, %s6
  %s9 = scalar_select 0, %s8, %s6
  $region1: #{tpu_custom_call.1} parent=0
    #allocation3 [shape = 'u8[8192]{0}', space=vmem, size = 0x2000, scoped, tag = 'output window, operand 0']
    #allocation4 [shape = 's32[2]{0}', space=sflag, size = 0x8, scoped, tag = 'scoped memory for tpu_custom_call.1']
    %10 = vsyncpa [#allocation4], 0
    %s11 = scalar_lea.sflag [#allocation4], 1
    %12 = vsyncpa %s11, 0
    loop: start=0, step=1, limit=10
    $region2: #{tpu_custom_call.1} parent=1 // loop_pre_header
      _
    $region3: #{tpu_custom_call.1} parent=1 // loop_header
      %s14 = sphi 0, %s18
      %p15 = scmp.ge.s32.totalorder %s14, 10
      %s21 = sphi 0, %s33
      %s22 = sphi 0, %s29
      %s23 = sphi 0, %s21
      %s24 = sphi 0, %s22
      %s25 = sphi 0, %s23
      %s26 = sphi 0, %s24
      %s36 = sphi 0, %s38
      %s39 = sphi 0, %s36
      %s40 = sphi 0, %s39
      %s56 = sphi 0, %s40
      %s62 = sphi 0, %s64
      %s65 = sphi 0, %s62
      %s66 = sphi 0, %s65
      %s82 = sphi 0, %s66
      %s88 = sphi 0, %s90
      %s91 = sphi 0, %s88
      %s92 = sphi 0, %s91
      %s108 = sphi 0, %s92
      %s114 = sphi 0, %s116
      %s117 = sphi 0, %s114
      %s118 = sphi 0, %s117
      %s134 = sphi 0, %s118
      %s140 = sphi 0, %s142
      %s143 = sphi 0, %s140
      %s144 = sphi 0, %s143
      %s160 = sphi 0, %s144
      %s166 = sphi 0, %s168
      %s169 = sphi 0, %s166
      %s170 = sphi 0, %s169
      %s186 = sphi 0, %s170
    $region4: #{tpu_custom_call.1} parent=1 // loop_header_branch
      %17 = sbr.rel (%p15) target = $region8
    $region5: #{tpu_custom_call.1} parent=1 // loop_body
      %s19 = ssub.s32 %s14, 1
      %s20 = ssub.s32 %s14, 2
      %s27 = sadd.s32 1, %s22
      %p28 = scmp.ge.s32.totalorder %s27, 4
      %s29 = scalar_select %p28, 0, %s27
      %s30 = sadd.s32 1, %s21
      %s31 = scalar_select %p28, %s30, %s21
      %p32 = scmp.ge.s32.totalorder %s31, 2
      %s33 = scalar_select %p32, 0, %s31
      %s34 = ssub.s32 %s21, %s33
      %p35 = scmp.eq.s32.totalorder %s34, 0
      %s37 = sadd.s32 %s36, 1
      %s38 = scalar_select %p35, %s36, %s37
      %p41 = pneg %p35
      %p42 = scmp.eq.s32.totalorder %s14, 7
      %p43 = por %p41, %p42
      %p44 = scmp.ne.s32.totalorder %s36, %s39
      %p45 = scmp.eq.s32.totalorder %s14, 0
      %p46 = por %p44, %p45
      %p47 = scmp.ne.s32.totalorder %s36, %s39
      %p48 = scmp.eq.s32.totalorder %s19, 7
      %p49 = por %p47, %p48
      %p50 = scmp.ne.s32.totalorder %s39, %s40
      %p51 = scmp.eq.s32.totalorder %s19, 0
      %p52 = por %p50, %p51
      %p53 = scmp.ne.s32.totalorder %s39, %s40
      %p54 = scmp.eq.s32.totalorder %s20, 7
      %p55 = por %p53, %p54
      %p57 = scmp.ne.s32.totalorder %s40, %s56
      %p58 = scmp.eq.s32.totalorder %s20, 0
      %p59 = por %p57, %p58
      %s60 = ssub.s32 %s22, %s29
      %p61 = scmp.eq.s32.totalorder %s60, 0
      %s63 = sadd.s32 %s62, 1
      %s64 = scalar_select %p61, %s62, %s63
      %p67 = pneg %p61
      %p68 = scmp.eq.s32.totalorder %s14, 7
      %p69 = por %p67, %p68
      %p70 = scmp.ne.s32.totalorder %s62, %s65
      %p71 = scmp.eq.s32.totalorder %s14, 0
      %p72 = por %p70, %p71
      %p73 = scmp.ne.s32.totalorder %s62, %s65
      %p74 = scmp.eq.s32.totalorder %s19, 7
      %p75 = por %p73, %p74
      %p76 = scmp.ne.s32.totalorder %s65, %s66
      %p77 = scmp.eq.s32.totalorder %s19, 0
      %p78 = por %p76, %p77
      %p79 = scmp.ne.s32.totalorder %s65, %s66
      %p80 = scmp.eq.s32.totalorder %s20, 7
      %p81 = por %p79, %p80
      %p83 = scmp.ne.s32.totalorder %s66, %s82
      %p84 = scmp.eq.s32.totalorder %s20, 0
      %p85 = por %p83, %p84
      %s86 = ssub.s32 %s22, %s29
      %p87 = scmp.eq.s32.totalorder %s86, 0
      %s89 = sadd.s32 %s88, 1
      %s90 = scalar_select %p87, %s88, %s89
      %p93 = pneg %p87
      %p94 = scmp.eq.s32.totalorder %s14, 7
      %p95 = por %p93, %p94
      %p96 = scmp.ne.s32.totalorder %s88, %s91
      %p97 = scmp.eq.s32.totalorder %s14, 0
      %p98 = por %p96, %p97
      %p99 = scmp.ne.s32.totalorder %s88, %s91
      %p100 = scmp.eq.s32.totalorder %s19, 7
      %p101 = por %p99, %p100
      %p102 = scmp.ne.s32.totalorder %s91, %s92
      %p103 = scmp.eq.s32.totalorder %s19, 0
      %p104 = por %p102, %p103
      %p105 = scmp.ne.s32.totalorder %s91, %s92
      %p106 = scmp.eq.s32.totalorder %s20, 7
      %p107 = por %p105, %p106
      %p109 = scmp.ne.s32.totalorder %s92, %s108
      %p110 = scmp.eq.s32.totalorder %s20, 0
      %p111 = por %p109, %p110
      %s112 = ssub.s32 %s22, %s29
      %p113 = scmp.eq.s32.totalorder %s112, 0
      %s115 = sadd.s32 %s114, 1
      %s116 = scalar_select %p113, %s114, %s115
      %p119 = pneg %p113
      %p120 = scmp.eq.s32.totalorder %s14, 7
      %p121 = por %p119, %p120
      %p122 = scmp.ne.s32.totalorder %s114, %s117
      %p123 = scmp.eq.s32.totalorder %s14, 0
      %p124 = por %p122, %p123
      %p125 = scmp.ne.s32.totalorder %s114, %s117
      %p126 = scmp.eq.s32.totalorder %s19, 7
      %p127 = por %p125, %p126
      %p128 = scmp.ne.s32.totalorder %s117, %s118
      %p129 = scmp.eq.s32.totalorder %s19, 0
      %p130 = por %p128, %p129
      %p131 = scmp.ne.s32.totalorder %s117, %s118
      %p132 = scmp.eq.s32.totalorder %s20, 7
      %p133 = por %p131, %p132
      %p135 = scmp.ne.s32.totalorder %s118, %s134
      %p136 = scmp.eq.s32.totalorder %s20, 0
      %p137 = por %p135, %p136
      %s138 = ssub.s32 %s22, %s29
      %p139 = scmp.eq.s32.totalorder %s138, 0
      %s141 = sadd.s32 %s140, 1
      %s142 = scalar_select %p139, %s140, %s141
      %p145 = pneg %p139
      %p146 = scmp.eq.s32.totalorder %s14, 7
      %p147 = por %p145, %p146
      %p148 = scmp.ne.s32.totalorder %s140, %s143
      %p149 = scmp.eq.s32.totalorder %s14, 0
      %p150 = por %p148, %p149
      %p151 = scmp.ne.s32.totalorder %s140, %s143
      %p152 = scmp.eq.s32.totalorder %s19, 7
      %p153 = por %p151, %p152
      %p154 = scmp.ne.s32.totalorder %s143, %s144
      %p155 = scmp.eq.s32.totalorder %s19, 0
      %p156 = por %p154, %p155
      %p157 = scmp.ne.s32.totalorder %s143, %s144
      %p158 = scmp.eq.s32.totalorder %s20, 7
      %p159 = por %p157, %p158
      %p161 = scmp.ne.s32.totalorder %s144, %s160
      %p162 = scmp.eq.s32.totalorder %s20, 0
      %p163 = por %p161, %p162
      %s164 = ssub.s32 %s21, %s33
      %p165 = scmp.eq.s32.totalorder %s164, 0
      %s167 = sadd.s32 %s166, 1
      %s168 = scalar_select %p165, %s166, %s167
      %p171 = pneg %p165
      %p172 = scmp.eq.s32.totalorder %s14, 7
      %p173 = por %p171, %p172
      %p174 = scmp.ne.s32.totalorder %s166, %s169
      %p175 = scmp.eq.s32.totalorder %s14, 0
      %p176 = por %p174, %p175
      %p177 = scmp.ne.s32.totalorder %s166, %s169
      %p178 = scmp.eq.s32.totalorder %s19, 7
      %p179 = por %p177, %p178
      %p180 = scmp.ne.s32.totalorder %s169, %s170
      %p181 = scmp.eq.s32.totalorder %s19, 0
      %p182 = por %p180, %p181
      %p183 = scmp.ne.s32.totalorder %s169, %s170
      %p184 = scmp.eq.s32.totalorder %s20, 7
      %p185 = por %p183, %p184
      %p187 = scmp.ne.s32.totalorder %s170, %s186
      %p188 = scmp.eq.s32.totalorder %s20, 0
      %p189 = por %p187, %p188
      %p190 = scmp.le.s32.totalorder 1, %s14
      %p191 = scmp.lt.s32.totalorder %s14, 9
      %p192 = pnand %p190, %p191
      %p193 = pneg %p192
      // Predicated region
      $region9: #{tpu_custom_call.1} parent=5 // pred_check
        _
      $region10: #{tpu_custom_call.1} parent=5 // pred_check_branch
        %195 = sbr.rel (%p192) target = $region12
      $region11: #{tpu_custom_call.1} parent=5 // pred_region
        %s196 = ssub.s32 %s14, 1
      $region12: #{tpu_custom_call.1} parent=5 // pred_fallthru
        _
      %p197 = scmp.lt.s32.totalorder %s14, 8
      // Predicated region
      $region13: #{tpu_custom_call.1} parent=5 // pred_check
        %p198 = pneg %p197
      $region14: #{tpu_custom_call.1} parent=5 // pred_check_branch
        %200 = sbr.rel (%p198) target = $region16
      $region15: #{tpu_custom_call.1} parent=5 // pred_region
        // Predicated region
        $region17: #{tpu_custom_call.1} parent=15 // pred_check
          %p201 = pneg %p46
        $region18: #{tpu_custom_call.1} parent=15 // pred_check_branch
          %203 = sbr.rel (%p201) target = $region20
        $region19: #{tpu_custom_call.1} parent=15 // pred_region
          %p204 = scmp.lt.s32.totalorder %s21, 1
          %s205 = scalar_select %p204, %s21, 1
          %s206 = smul.addr %s205, 8
          %s207 = scalar_lea.vmem %s0, %s206
        $region20: #{tpu_custom_call.1} parent=15 // pred_fallthru
          _
        // Predicated region
        $region21: #{tpu_custom_call.1} parent=15 // pred_check
          %p208 = pneg %p72
        $region22: #{tpu_custom_call.1} parent=15 // pred_check_branch
          %210 = sbr.rel (%p208) target = $region24
        $region23: #{tpu_custom_call.1} parent=15 // pred_region
          %p211 = scmp.lt.s32.totalorder %s22, 3
          %s212 = scalar_select %p211, %s22, 3
          %s213 = smul.addr %s212, 8
          %s214 = scalar_lea.vmem %s1, %s213
        $region24: #{tpu_custom_call.1} parent=15 // pred_fallthru
          _
        // Predicated region
        $region25: #{tpu_custom_call.1} parent=15 // pred_check
          %p215 = pneg %p98
        $region26: #{tpu_custom_call.1} parent=15 // pred_check_branch
          %217 = sbr.rel (%p215) target = $region28
        $region27: #{tpu_custom_call.1} parent=15 // pred_region
          %p218 = scmp.lt.s32.totalorder %s22, 3
          %s219 = scalar_select %p218, %s22, 3
          %s220 = smul.addr %s219, 8
          %s221 = scalar_lea.vmem %s2, %s220
        $region28: #{tpu_custom_call.1} parent=15 // pred_fallthru
          _
        // Predicated region
        $region29: #{tpu_custom_call.1} parent=15 // pred_check
          %p222 = pneg %p124
        $region30: #{tpu_custom_call.1} parent=15 // pred_check_branch
          %224 = sbr.rel (%p222) target = $region32
        $region31: #{tpu_custom_call.1} parent=15 // pred_region
          %p225 = scmp.lt.s32.totalorder %s22, 3
          %s226 = scalar_select %p225, %s22, 3
          %s227 = smul.addr %s226, 8
          %s228 = scalar_lea.vmem %s3, %s227
        $region32: #{tpu_custom_call.1} parent=15 // pred_fallthru
          _
        // Predicated region
        $region33: #{tpu_custom_call.1} parent=15 // pred_check
          %p229 = pneg %p150
        $region34: #{tpu_custom_call.1} parent=15 // pred_check_branch
          %231 = sbr.rel (%p229) target = $region36
        $region35: #{tpu_custom_call.1} parent=15 // pred_region
          %p232 = scmp.lt.s32.totalorder %s22, 3
          %s233 = scalar_select %p232, %s22, 3
          %s234 = smul.addr %s233, 4
          %s235 = smul.addr %s234, 8
          %s236 = scalar_lea.vmem %s4, %s235
        $region36: #{tpu_custom_call.1} parent=15 // pred_fallthru
          _
      $region16: #{tpu_custom_call.1} parent=5 // pred_fallthru
        _
      %p237 = scmp.le.s32.totalorder 1, %s14
      %p238 = scmp.lt.s32.totalorder %s14, 9
      %p239 = pnand %p237, %p238
      %p240 = pneg %p239
      // Predicated region
      $region37: #{tpu_custom_call.1} parent=5 // pred_check
        _
      $region38: #{tpu_custom_call.1} parent=5 // pred_check_branch
        %242 = sbr.rel (%p239) target = $region40
      $region39: #{tpu_custom_call.1} parent=5 // pred_region
        %s243 = ssub.s32 %s14, 1
        %p244 = scmp.lt.s32.totalorder %s23, 1
        %s245 = scalar_select %p244, %s23, 1
        %s246 = smul.addr %s245, 8
        %s247 = scalar_lea.vmem %s0, %s246
        %p248 = pneg %p52
        %p249 = pneg %p49
        %p250 = scmp.lt.s32.totalorder %s24, 3
        %s251 = scalar_select %p250, %s24, 3
        %s252 = smul.addr %s251, 8
        %s253 = scalar_lea.vmem %s1, %s252
        %p254 = pneg %p78
        %p255 = pneg %p75
        %p256 = scmp.lt.s32.totalorder %s24, 3
        %s257 = scalar_select %p256, %s24, 3
        %s258 = smul.addr %s257, 8
        %s259 = scalar_lea.vmem %s2, %s258
        %p260 = pneg %p104
        %p261 = pneg %p101
        %p262 = scmp.lt.s32.totalorder %s24, 3
        %s263 = scalar_select %p262, %s24, 3
        %s264 = smul.addr %s263, 8
        %s265 = scalar_lea.vmem %s3, %s264
        %p266 = pneg %p130
        %p267 = pneg %p127
        %p268 = scmp.lt.s32.totalorder %s24, 3
        %s269 = scalar_select %p268, %s24, 3
        %s270 = smul.addr %s269, 4
        %s271 = smul.addr %s270, 8
        %s272 = scalar_lea.vmem %s4, %s271
        %p273 = pneg %p156
        %p274 = pneg %p153
        %p275 = pneg %p182
        %p276 = pneg %p179
        %s277 = sand.u32 %s169, 1
        %s278 = scalar_lea.sflag [#allocation4], %s277
        %s279 = sand.u32 %s169, 1
        %s280 = smul.addr %s279, 8
        %s281 = scalar_lea.vmem [#allocation3], %s280
        %p282 = scmp.lt.s32.totalorder %s23, 1
        %s283 = scalar_select %p282, %s23, 1
        %s284 = smul.addr %s283, 8
        %s285 = scalar_lea.vmem %s0, %s284
        %p286 = scmp.lt.s32.totalorder %s24, 3
        %s287 = scalar_select %p286, %s24, 3
        %s288 = smul.addr %s287, 8
        %s289 = scalar_lea.vmem %s1, %s288
        %p290 = scmp.lt.s32.totalorder %s24, 3
        %s291 = scalar_select %p290, %s24, 3
        %s292 = smul.addr %s291, 8
        %s293 = scalar_lea.vmem %s2, %s292
        %p294 = scmp.lt.s32.totalorder %s24, 3
        %s295 = scalar_select %p294, %s24, 3
        %s296 = smul.addr %s295, 8
        %s297 = scalar_lea.vmem %s3, %s296
        %p298 = scmp.lt.s32.totalorder %s24, 3
        %s299 = scalar_select %p298, %s24, 3
        %s300 = smul.addr %s299, 4
        %s301 = smul.addr %s300, 8
        %s302 = scalar_lea.vmem %s4, %s301
        %p303 = scmp.eq.s32.totalorder %s24, 0
        // Predicated region
        $region41: #{tpu_custom_call.1} parent=39 // pred_check
          %p304 = pneg %p303
        $region42: #{tpu_custom_call.1} parent=39 // pred_check_branch
          %306 = sbr.rel (%p304) target = $region44
        $region43: #{tpu_custom_call.1} parent=39 // pred_region
          %vm307 = vcmask 261120
          %308 = vst.msk [vmem:[#allocation2] sm:$0xff] %vm307, 0.0
        $region44: #{tpu_custom_call.1} parent=39 // pred_fallthru
          _
        %v309 = vld [vmem:[%s285] sm:$0xff]
        %v310 = vld [vmem:[%s289] sm:$0xff]
        %v311 = vld [vmem:[%s293] sm:$0xff]
        %v312 = vld [vmem:[%s297] sm:$0xff]
        %v313 = vld [vmem:[%s302] sm:$0xff]
        %v314 = vld [vmem:[%s302 + $0x8] sm:$0xff]
        %v315 = vld [vmem:[%s302 + $0x10] sm:$0xff]
        %v316 = vld [vmem:[%s302 + $0x18] sm:$0xff]
        %vm317 = vcmask 261120
        %v319 = vsel %vm317, %v309, 0
        %v322 = vsel %vm317, %v310, 0
        %324 = vmatprep.subr.mxu0 0.0
        %325 = vmatpush1.xpose.msra.mxu0 0.0
        %326 = vmatprep.subr.mxu0 0.0
        %327 = vmatpush1.xpose.msra.mxu0 0.0
        %328 = vmatprep.subr.mxu0 0.0
        %329 = vmatpush1.xpose.msra.mxu0 0.0
        %330 = vmatprep.subr.mxu0 0.0
        %331 = vmatpush1.xpose.msra.mxu0 0.0
        %332 = vmatprep.subr.mxu0 0.0
        %333 = vmatpush1.xpose.msra.mxu0 0.0
        %334 = vmatprep.subr.mxu0 0.0
        %335 = vmatpush1.xpose.msra.mxu0 0.0
        %336 = vmatprep.subr.mxu0 0.0
        %337 = vmatpush1.xpose.msra.mxu0 0.0
        %338 = vmatprep.subr.mxu0 0.0
        %339 = vmatpush1.xpose.msra.mxu0 0.0
        %340 = vmatprep.subr.mxu0 0.0
        %341 = vmatpush1.xpose.msra.mxu0 0.0
        %342 = vmatprep.subr.mxu0 0.0
        %343 = vmatpush1.xpose.msra.mxu0 0.0
        %344 = vmatprep.subr.mxu0 0.0
        %345 = vmatpush1.xpose.msra.mxu0 0.0
        %346 = vmatprep.subr.mxu0 0.0
        %347 = vmatpush1.xpose.msra.mxu0 0.0
        %348 = vmatprep.subr.mxu0 0.0
        %349 = vmatpush1.xpose.msra.mxu0 0.0
        %350 = vmatprep.subr.mxu0 0.0
        %351 = vmatpush1.xpose.msra.mxu0 0.0
        %352 = vmatprep.subr.mxu0 0.0
        %353 = vmatpush1.xpose.msra.mxu0 0.0
        %354 = vmatprep.subr.mxu0 0.0
        %355 = vmatpush1.xpose.msra.mxu0 %v322
        %356 = vmatprep.subr.mxu0 0.0
        %357 = vmatpush2.xpose.msra.mxu0 0.0
        %358 = vmatprep.subr.mxu0 0.0
        %359 = vmatpush2.xpose.msra.mxu0 0.0
        %360 = vmatprep.subr.mxu0 0.0
        %361 = vmatpush2.xpose.msra.mxu0 0.0
        %362 = vmatprep.subr.mxu0 0.0
        %363 = vmatpush2.xpose.msra.mxu0 0.0
        %364 = vmatprep.subr.mxu0 0.0
        %365 = vmatpush2.xpose.msra.mxu0 0.0
        %366 = vmatprep.subr.mxu0 0.0
        %367 = vmatpush2.xpose.msra.mxu0 0.0
        %368 = vmatprep.subr.mxu0 0.0
        %369 = vmatpush2.xpose.msra.mxu0 0.0
        %370 = vmatprep.subr.mxu0 0.0
        %371 = vmatpush2.xpose.msra.mxu0 0.0
        %372 = vmatprep.subr.mxu0 0.0
        %373 = vmatpush2.xpose.msra.mxu0 0.0
        %374 = vmatprep.subr.mxu0 0.0
        %375 = vmatpush2.xpose.msra.mxu0 0.0
        %376 = vmatprep.subr.mxu0 0.0
        %377 = vmatpush2.xpose.msra.mxu0 0.0
        %378 = vmatprep.subr.mxu0 0.0
        %379 = vmatpush2.xpose.msra.mxu0 0.0
        %380 = vmatprep.subr.mxu0 0.0
        %381 = vmatpush2.xpose.msra.mxu0 0.0
        %382 = vmatprep.subr.mxu0 0.0
        %383 = vmatpush2.xpose.msra.mxu0 0.0
        %384 = vmatprep.subr.mxu0 0.0
        %385 = vmatpush2.xpose.msra.mxu0 0.0
        %386 = vmatprep.subr.mxu0 0.0
        %387 = vmatpush2.xpose.msra.mxu0 0.0
        %388 = vmatprep.mubr.f32.mxu0 0.0
        %389 = vmatmul.mubr.f32.gmra.mxu0 %v319
        %v390 = vpop.f32.mrf.mxu0
        %v391 = vadd.f32 0.0, %v390
        %v392 = vpop.f32.mrf.mxu0
        %393 = vdwg.mxu0
        %v395 = vsel %vm317, %v311, 0
        %397 = vmatprep.subr.mxu0 0.0
        %398 = vmatpush1.xpose.msra.mxu0 0.0
        %399 = vmatprep.subr.mxu0 0.0
        %400 = vmatpush1.xpose.msra.mxu0 0.0
        %401 = vmatprep.subr.mxu0 0.0
        %402 = vmatpush1.xpose.msra.mxu0 0.0
        %403 = vmatprep.subr.mxu0 0.0
        %404 = vmatpush1.xpose.msra.mxu0 0.0
        %405 = vmatprep.subr.mxu0 0.0
        %406 = vmatpush1.xpose.msra.mxu0 0.0
        %407 = vmatprep.subr.mxu0 0.0
        %408 = vmatpush1.xpose.msra.mxu0 0.0
        %409 = vmatprep.subr.mxu0 0.0
        %410 = vmatpush1.xpose.msra.mxu0 0.0
        %411 = vmatprep.subr.mxu0 0.0
        %412 = vmatpush1.xpose.msra.mxu0 0.0
        %413 = vmatprep.subr.mxu0 0.0
        %414 = vmatpush1.xpose.msra.mxu0 0.0
        %415 = vmatprep.subr.mxu0 0.0
        %416 = vmatpush1.xpose.msra.mxu0 0.0
        %417 = vmatprep.subr.mxu0 0.0
        %418 = vmatpush1.xpose.msra.mxu0 0.0
        %419 = vmatprep.subr.mxu0 0.0
        %420 = vmatpush1.xpose.msra.mxu0 0.0
        %421 = vmatprep.subr.mxu0 0.0
        %422 = vmatpush1.xpose.msra.mxu0 0.0
        %423 = vmatprep.subr.mxu0 0.0
        %424 = vmatpush1.xpose.msra.mxu0 0.0
        %425 = vmatprep.subr.mxu0 0.0
        %426 = vmatpush1.xpose.msra.mxu0 0.0
        %427 = vmatprep.subr.mxu0 0.0
        %428 = vmatpush1.xpose.msra.mxu0 %v395
        %429 = vmatprep.subr.mxu0 0.0
        %430 = vmatpush2.xpose.msra.mxu0 0.0
        %431 = vmatprep.subr.mxu0 0.0
        %432 = vmatpush2.xpose.msra.mxu0 0.0
        %433 = vmatprep.subr.mxu0 0.0
        %434 = vmatpush2.xpose.msra.mxu0 0.0
        %435 = vmatprep.subr.mxu0 0.0
        %436 = vmatpush2.xpose.msra.mxu0 0.0
        %437 = vmatprep.subr.mxu0 0.0
        %438 = vmatpush2.xpose.msra.mxu0 0.0
        %439 = vmatprep.subr.mxu0 0.0
        %440 = vmatpush2.xpose.msra.mxu0 0.0
        %441 = vmatprep.subr.mxu0 0.0
        %442 = vmatpush2.xpose.msra.mxu0 0.0
        %443 = vmatprep.subr.mxu0 0.0
        %444 = vmatpush2.xpose.msra.mxu0 0.0
        %445 = vmatprep.subr.mxu0 0.0
        %446 = vmatpush2.xpose.msra.mxu0 0.0
        %447 = vmatprep.subr.mxu0 0.0
        %448 = vmatpush2.xpose.msra.mxu0 0.0
        %449 = vmatprep.subr.mxu0 0.0
        %450 = vmatpush2.xpose.msra.mxu0 0.0
        %451 = vmatprep.subr.mxu0 0.0
        %452 = vmatpush2.xpose.msra.mxu0 0.0
        %453 = vmatprep.subr.mxu0 0.0
        %454 = vmatpush2.xpose.msra.mxu0 0.0
        %455 = vmatprep.subr.mxu0 0.0
        %456 = vmatpush2.xpose.msra.mxu0 0.0
        %457 = vmatprep.subr.mxu0 0.0
        %458 = vmatpush2.xpose.msra.mxu0 0.0
        %459 = vmatprep.subr.mxu0 0.0
        %460 = vmatpush2.xpose.msra.mxu0 0.0
        %461 = vmatprep.mubr.f32.mxu0 0.0
        %462 = vmatmul.mubr.f32.gmra.mxu0 %v319
        %v463 = vpop.f32.mrf.mxu0
        %v464 = vadd.f32 0.0, %v463
        %v465 = vpop.f32.mrf.mxu0
        %466 = vdwg.mxu0
        %v468 = vsel %vm317, %v312, 0
        %470 = vmatprep.subr.mxu0 0.0
        %471 = vmatpush1.xpose.msra.mxu0 0.0
        %472 = vmatprep.subr.mxu0 0.0
        %473 = vmatpush1.xpose.msra.mxu0 0.0
        %474 = vmatprep.subr.mxu0 0.0
        %475 = vmatpush1.xpose.msra.mxu0 0.0
        %476 = vmatprep.subr.mxu0 0.0
        %477 = vmatpush1.xpose.msra.mxu0 0.0
        %478 = vmatprep.subr.mxu0 0.0
        %479 = vmatpush1.xpose.msra.mxu0 0.0
        %480 = vmatprep.subr.mxu0 0.0
        %481 = vmatpush1.xpose.msra.mxu0 0.0
        %482 = vmatprep.subr.mxu0 0.0
        %483 = vmatpush1.xpose.msra.mxu0 0.0
        %484 = vmatprep.subr.mxu0 0.0
        %485 = vmatpush1.xpose.msra.mxu0 0.0
        %486 = vmatprep.subr.mxu0 0.0
        %487 = vmatpush1.xpose.msra.mxu0 0.0
        %488 = vmatprep.subr.mxu0 0.0
        %489 = vmatpush1.xpose.msra.mxu0 0.0
        %490 = vmatprep.subr.mxu0 0.0
        %491 = vmatpush1.xpose.msra.mxu0 0.0
        %492 = vmatprep.subr.mxu0 0.0
        %493 = vmatpush1.xpose.msra.mxu0 0.0
        %494 = vmatprep.subr.mxu0 0.0
        %495 = vmatpush1.xpose.msra.mxu0 0.0
        %496 = vmatprep.subr.mxu0 0.0
        %497 = vmatpush1.xpose.msra.mxu0 0.0
        %498 = vmatprep.subr.mxu0 0.0
        %499 = vmatpush1.xpose.msra.mxu0 0.0
        %500 = vmatprep.subr.mxu0 0.0
        %501 = vmatpush1.xpose.msra.mxu0 %v468
        %502 = vmatprep.subr.mxu0 0.0
        %503 = vmatpush2.xpose.msra.mxu0 0.0
        %504 = vmatprep.subr.mxu0 0.0
        %505 = vmatpush2.xpose.msra.mxu0 0.0
        %506 = vmatprep.subr.mxu0 0.0
        %507 = vmatpush2.xpose.msra.mxu0 0.0
        %508 = vmatprep.subr.mxu0 0.0
        %509 = vmatpush2.xpose.msra.mxu0 0.0
        %510 = vmatprep.subr.mxu0 0.0
        %511 = vmatpush2.xpose.msra.mxu0 0.0
        %512 = vmatprep.subr.mxu0 0.0
        %513 = vmatpush2.xpose.msra.mxu0 0.0
        %514 = vmatprep.subr.mxu0 0.0
        %515 = vmatpush2.xpose.msra.mxu0 0.0
        %516 = vmatprep.subr.mxu0 0.0
        %517 = vmatpush2.xpose.msra.mxu0 0.0
        %518 = vmatprep.subr.mxu0 0.0
        %519 = vmatpush2.xpose.msra.mxu0 0.0
        %520 = vmatprep.subr.mxu0 0.0
        %521 = vmatpush2.xpose.msra.mxu0 0.0
        %522 = vmatprep.subr.mxu0 0.0
        %523 = vmatpush2.xpose.msra.mxu0 0.0
        %524 = vmatprep.subr.mxu0 0.0
        %525 = vmatpush2.xpose.msra.mxu0 0.0
        %526 = vmatprep.subr.mxu0 0.0
        %527 = vmatpush2.xpose.msra.mxu0 0.0
        %528 = vmatprep.subr.mxu0 0.0
        %529 = vmatpush2.xpose.msra.mxu0 0.0
        %530 = vmatprep.subr.mxu0 0.0
        %531 = vmatpush2.xpose.msra.mxu0 0.0
        %532 = vmatprep.subr.mxu0 0.0
        %533 = vmatpush2.xpose.msra.mxu0 0.0
        %534 = vmatprep.mubr.f32.mxu0 0.0
        %535 = vmatmul.mubr.f32.gmra.mxu0 %v319
        %v536 = vpop.f32.mrf.mxu0
        %v537 = vadd.f32 0.0, %v536
        %v538 = vpop.f32.mrf.mxu0
        %539 = vdwg.mxu0
        %vm540 = vcmask 64512
        %v542 = vsel %vm540, %v391, 0
        %v545 = vsel %vm540, %v464, 0
        %547 = vmatprep.subr.mxu0 0.0
        %548 = vmatpush1.xpose.msra.mxu0 0.0
        %549 = vmatprep.subr.mxu0 0.0
        %550 = vmatpush1.xpose.msra.mxu0 0.0
        %551 = vmatprep.subr.mxu0 0.0
        %552 = vmatpush1.xpose.msra.mxu0 0.0
        %553 = vmatprep.subr.mxu0 0.0
        %554 = vmatpush1.xpose.msra.mxu0 0.0
        %555 = vmatprep.subr.mxu0 0.0
        %556 = vmatpush1.xpose.msra.mxu0 0.0
        %557 = vmatprep.subr.mxu0 0.0
        %558 = vmatpush1.xpose.msra.mxu0 0.0
        %559 = vmatprep.subr.mxu0 0.0
        %560 = vmatpush1.xpose.msra.mxu0 0.0
        %561 = vmatprep.subr.mxu0 0.0
        %562 = vmatpush1.xpose.msra.mxu0 0.0
        %563 = vmatprep.subr.mxu0 0.0
        %564 = vmatpush1.xpose.msra.mxu0 0.0
        %565 = vmatprep.subr.mxu0 0.0
        %566 = vmatpush1.xpose.msra.mxu0 0.0
        %567 = vmatprep.subr.mxu0 0.0
        %568 = vmatpush1.xpose.msra.mxu0 0.0
        %569 = vmatprep.subr.mxu0 0.0
        %570 = vmatpush1.xpose.msra.mxu0 0.0
        %571 = vmatprep.subr.mxu0 0.0
        %572 = vmatpush1.xpose.msra.mxu0 0.0
        %573 = vmatprep.subr.mxu0 0.0
        %574 = vmatpush1.xpose.msra.mxu0 0.0
        %575 = vmatprep.subr.mxu0 0.0
        %576 = vmatpush1.xpose.msra.mxu0 0.0
        %577 = vmatprep.subr.mxu0 0.0
        %578 = vmatpush1.xpose.msra.mxu0 %v545
        %579 = vmatprep.subr.mxu0 0.0
        %580 = vmatpush2.xpose.msra.mxu0 0.0
        %581 = vmatprep.subr.mxu0 0.0
        %582 = vmatpush2.xpose.msra.mxu0 0.0
        %583 = vmatprep.subr.mxu0 0.0
        %584 = vmatpush2.xpose.msra.mxu0 0.0
        %585 = vmatprep.subr.mxu0 0.0
        %586 = vmatpush2.xpose.msra.mxu0 0.0
        %587 = vmatprep.subr.mxu0 0.0
        %588 = vmatpush2.xpose.msra.mxu0 0.0
        %589 = vmatprep.subr.mxu0 0.0
        %590 = vmatpush2.xpose.msra.mxu0 0.0
        %591 = vmatprep.subr.mxu0 0.0
        %592 = vmatpush2.xpose.msra.mxu0 0.0
        %593 = vmatprep.subr.mxu0 0.0
        %594 = vmatpush2.xpose.msra.mxu0 0.0
        %595 = vmatprep.subr.mxu0 0.0
        %596 = vmatpush2.xpose.msra.mxu0 0.0
        %597 = vmatprep.subr.mxu0 0.0
        %598 = vmatpush2.xpose.msra.mxu0 0.0
        %599 = vmatprep.subr.mxu0 0.0
        %600 = vmatpush2.xpose.msra.mxu0 0.0
        %601 = vmatprep.subr.mxu0 0.0
        %602 = vmatpush2.xpose.msra.mxu0 0.0
        %603 = vmatprep.subr.mxu0 0.0
        %604 = vmatpush2.xpose.msra.mxu0 0.0
        %605 = vmatprep.subr.mxu0 0.0
        %606 = vmatpush2.xpose.msra.mxu0 0.0
        %607 = vmatprep.subr.mxu0 0.0
        %608 = vmatpush2.xpose.msra.mxu0 0.0
        %609 = vmatprep.subr.mxu0 0.0
        %610 = vmatpush2.xpose.msra.mxu0 0.0
        %611 = vmatprep.mubr.f32.mxu0 0.0
        %612 = vmatmul.mubr.f32.gmra.mxu0 %v542
        %v613 = vpop.f32.mrf.mxu0
        %v614 = vadd.f32 0.0, %v613
        %v615 = vpop.f32.mrf.mxu0
        %616 = vdwg.mxu0
        %v617 = vsel %vm540, %v614, -inf
        %618 = vmax.xlane.f32.xlu0 %v617
        %v619 = vpop.xlane.xlu0 %618
        %v620 = vsub.f32 %v614, %v619
        %v621 = vmul.f32 %v620, 1.442695
        %v622 = vpow.pop %v621
        %v623 = vsel %vm540, %v622, 0.0
        %624 = vadd.xlane.f32.xlu0 %v623
        %v625 = vpop.xlane.xlu0 %624
        %v627 = vsel %vm540, %v622, 0
        %629 = vmatprep.subr.mxu0 0.0
        %630 = vmatpush1.msra.mxu0 0.0
        %631 = vmatprep.subr.mxu0 0.0
        %632 = vmatpush1.msra.mxu0 0.0
        %633 = vmatprep.subr.mxu0 0.0
        %634 = vmatpush1.msra.mxu0 0.0
        %635 = vmatprep.subr.mxu0 0.0
        %636 = vmatpush1.msra.mxu0 0.0
        %637 = vmatprep.subr.mxu0 0.0
        %638 = vmatpush1.msra.mxu0 0.0
        %639 = vmatprep.subr.mxu0 0.0
        %640 = vmatpush1.msra.mxu0 0.0
        %641 = vmatprep.subr.mxu0 0.0
        %642 = vmatpush1.msra.mxu0 0.0
        %643 = vmatprep.subr.mxu0 0.0
        %644 = vmatpush1.msra.mxu0 0.0
        %645 = vmatprep.subr.mxu0 0.0
        %646 = vmatpush1.msra.mxu0 0.0
        %647 = vmatprep.subr.mxu0 0.0
        %648 = vmatpush1.msra.mxu0 0.0
        %649 = vmatprep.subr.mxu0 0.0
        %650 = vmatpush1.msra.mxu0 0.0
        %651 = vmatprep.subr.mxu0 0.0
        %652 = vmatpush1.msra.mxu0 0.0
        %653 = vmatprep.subr.mxu0 0.0
        %654 = vmatpush1.msra.mxu0 0.0
        %655 = vmatprep.subr.mxu0 0.0
        %656 = vmatpush1.msra.mxu0 0.0
        %657 = vmatprep.subr.mxu0 0.0
        %658 = vmatpush1.msra.mxu0 0.0
        %659 = vmatprep.subr.mxu0 0.0
        %660 = vmatpush1.msra.mxu0 %v537
        %661 = vmatprep.subr.mxu0 0.0
        %662 = vmatpush2.msra.mxu0 0.0
        %663 = vmatprep.subr.mxu0 0.0
        %664 = vmatpush2.msra.mxu0 0.0
        %665 = vmatprep.subr.mxu0 0.0
        %666 = vmatpush2.msra.mxu0 0.0
        %667 = vmatprep.subr.mxu0 0.0
        %668 = vmatpush2.msra.mxu0 0.0
        %669 = vmatprep.subr.mxu0 0.0
        %670 = vmatpush2.msra.mxu0 0.0
        %671 = vmatprep.subr.mxu0 0.0
        %672 = vmatpush2.msra.mxu0 0.0
        %673 = vmatprep.subr.mxu0 0.0
        %674 = vmatpush2.msra.mxu0 0.0
        %675 = vmatprep.subr.mxu0 0.0
        %676 = vmatpush2.msra.mxu0 0.0
        %677 = vmatprep.subr.mxu0 0.0
        %678 = vmatpush2.msra.mxu0 0.0
        %679 = vmatprep.subr.mxu0 0.0
        %680 = vmatpush2.msra.mxu0 0.0
        %681 = vmatprep.subr.mxu0 0.0
        %682 = vmatpush2.msra.mxu0 0.0
        %683 = vmatprep.subr.mxu0 0.0
        %684 = vmatpush2.msra.mxu0 0.0
        %685 = vmatprep.subr.mxu0 0.0
        %686 = vmatpush2.msra.mxu0 0.0
        %687 = vmatprep.subr.mxu0 0.0
        %688 = vmatpush2.msra.mxu0 0.0
        %689 = vmatprep.subr.mxu0 0.0
        %690 = vmatpush2.msra.mxu0 0.0
        %691 = vmatprep.subr.mxu0 0.0
        %692 = vmatpush2.msra.mxu0 0.0
        %693 = vmatprep.mubr.f32.mxu0 0.0
        %694 = vmatmul.mubr.f32.gmra.mxu0 %v627
        %v695 = vpop.f32.mrf.mxu0
        %v696 = vadd.f32 0.0, %v695
        %v697 = vpop.f32.mrf.mxu0
        %698 = vdwg.mxu0
        %v699 = vrcp.pop %v625
        %v700 = vmul.f32 %v696, %v699
        %v701 = vld [vmem:[#allocation2] sm:$0xff]
        %v703 = vsel %vm540, %v700, 0
        %v706 = vsel %vm540, %v313, 0
        %v709 = vsel %vm540, %v314, 0
        %v712 = vsel %vm540, %v315, 0
        %v715 = vsel %vm540, %v316, 0
        %717 = vmatprep.subr.mxu0 0.0
        %718 = vmatpush1.xpose.msra.mxu0 0.0
        %719 = vmatprep.subr.mxu0 0.0
        %720 = vmatpush1.xpose.msra.mxu0 0.0
        %721 = vmatprep.subr.mxu0 0.0
        %722 = vmatpush1.xpose.msra.mxu0 0.0
        %723 = vmatprep.subr.mxu0 0.0
        %724 = vmatpush1.xpose.msra.mxu0 0.0
        %725 = vmatprep.subr.mxu0 0.0
        %726 = vmatpush1.xpose.msra.mxu0 0.0
        %727 = vmatprep.subr.mxu0 0.0
        %728 = vmatpush1.xpose.msra.mxu0 0.0
        %729 = vmatprep.subr.mxu0 0.0
        %730 = vmatpush1.xpose.msra.mxu0 0.0
        %731 = vmatprep.subr.mxu0 0.0
        %732 = vmatpush1.xpose.msra.mxu0 0.0
        %733 = vmatprep.subr.mxu0 0.0
        %734 = vmatpush1.xpose.msra.mxu0 0.0
        %735 = vmatprep.subr.mxu0 0.0
        %736 = vmatpush1.xpose.msra.mxu0 0.0
        %737 = vmatprep.subr.mxu0 0.0
        %738 = vmatpush1.xpose.msra.mxu0 0.0
        %739 = vmatprep.subr.mxu0 0.0
        %740 = vmatpush1.xpose.msra.mxu0 0.0
        %741 = vmatprep.subr.mxu0 0.0
        %742 = vmatpush1.xpose.msra.mxu0 %v715
        %743 = vmatprep.subr.mxu0 0.0
        %744 = vmatpush1.xpose.msra.mxu0 %v712
        %745 = vmatprep.subr.mxu0 0.0
        %746 = vmatpush1.xpose.msra.mxu0 %v709
        %747 = vmatprep.subr.mxu0 0.0
        %748 = vmatpush1.xpose.msra.mxu0 %v706
        %749 = vmatprep.subr.mxu0 0.0
        %750 = vmatpush2.xpose.msra.mxu0 0.0
        %751 = vmatprep.subr.mxu0 0.0
        %752 = vmatpush2.xpose.msra.mxu0 0.0
        %753 = vmatprep.subr.mxu0 0.0
        %754 = vmatpush2.xpose.msra.mxu0 0.0
        %755 = vmatprep.subr.mxu0 0.0
        %756 = vmatpush2.xpose.msra.mxu0 0.0
        %757 = vmatprep.subr.mxu0 0.0
        %758 = vmatpush2.xpose.msra.mxu0 0.0
        %759 = vmatprep.subr.mxu0 0.0
        %760 = vmatpush2.xpose.msra.mxu0 0.0
        %761 = vmatprep.subr.mxu0 0.0
        %762 = vmatpush2.xpose.msra.mxu0 0.0
        %763 = vmatprep.subr.mxu0 0.0
        %764 = vmatpush2.xpose.msra.mxu0 0.0
        %765 = vmatprep.subr.mxu0 0.0
        %766 = vmatpush2.xpose.msra.mxu0 0.0
        %767 = vmatprep.subr.mxu0 0.0
        %768 = vmatpush2.xpose.msra.mxu0 0.0
        %769 = vmatprep.subr.mxu0 0.0
        %770 = vmatpush2.xpose.msra.mxu0 0.0
        %771 = vmatprep.subr.mxu0 0.0
        %772 = vmatpush2.xpose.msra.mxu0 0.0
        %773 = vmatprep.subr.mxu0 0.0
        %774 = vmatpush2.xpose.msra.mxu0 0.0
        %775 = vmatprep.subr.mxu0 0.0
        %776 = vmatpush2.xpose.msra.mxu0 0.0
        %777 = vmatprep.subr.mxu0 0.0
        %778 = vmatpush2.xpose.msra.mxu0 0.0
        %779 = vmatprep.subr.mxu0 0.0
        %780 = vmatpush2.xpose.msra.mxu0 0.0
        %781 = vmatprep.mubr.f32.mxu0 0.0
        %782 = vmatmul.mubr.f32.gmra.mxu0 %v703
        %v783 = vpop.f32.mrf.mxu0
        %v784 = vadd.f32 0.0, %v783
        %v785 = vpop.f32.mrf.mxu0
        %786 = vdwg.mxu0
        %v787 = vadd.f32 %v701, %v784
        %788 = vst.msk [vmem:[#allocation2] sm:$0xff] %vm317, %v787
        %p789 = scmp.eq.s32.totalorder %s24, 3
        // Predicated region
        $region45: #{tpu_custom_call.1} parent=39 // pred_check
          %p790 = pneg %p789
        $region46: #{tpu_custom_call.1} parent=39 // pred_check_branch
          %792 = sbr.rel (%p790) target = $region48
        $region47: #{tpu_custom_call.1} parent=39 // pred_region
          %v793 = vld [vmem:[#allocation2] sm:$0xff]
          %794 = vst.msk [vmem:[%s281] sm:$0xff] %vm317, %v793
        $region48: #{tpu_custom_call.1} parent=39 // pred_fallthru
          _
        %s795 = sand.u32 %s169, 1
        %s796 = scalar_lea.sflag [#allocation4], %s795
        %s797 = sand.u32 %s169, 1
        %s798 = smul.addr %s797, 8
        %s799 = scalar_lea.vmem [#allocation3], %s798
        // Predicated region
        $region49: #{tpu_custom_call.1} parent=39 // pred_check
          %p800 = pneg %p179
        $region50: #{tpu_custom_call.1} parent=39 // pred_check_branch
          %802 = sbr.rel (%p800) target = $region52
        $region51: #{tpu_custom_call.1} parent=39 // pred_region
          %s804 = ssub.s32 128, 128
          %805 = vsyncadd %s796, %s804
          %s806 = smul.addr %s23, 128
          %s807 = scalar_lea.hbm %s5, %s806
          %s809 = sshll.u32 %s799, 4
          %s810 = int_to_ptr.vmem [resolvable:$true] %s809
          %812 = dma.vmem_to_hbm [thread:$0]  %s810, 128, %s807, %s796
        $region52: #{tpu_custom_call.1} parent=39 // pred_fallthru
          _
      $region40: #{tpu_custom_call.1} parent=5 // pred_fallthru
        _
      %p813 = scmp.le.s32.totalorder 2, %s14
      // Predicated region
      $region53: #{tpu_custom_call.1} parent=5 // pred_check
        %p814 = pneg %p813
      $region54: #{tpu_custom_call.1} parent=5 // pred_check_branch
        %816 = sbr.rel (%p814) target = $region56
      $region55: #{tpu_custom_call.1} parent=5 // pred_region
        %s817 = ssub.s32 %s14, 2
        // Predicated region
        $region57: #{tpu_custom_call.1} parent=55 // pred_check
          %p818 = pneg %p185
        $region58: #{tpu_custom_call.1} parent=55 // pred_check_branch
          %820 = sbr.rel (%p818) target = $region60
        $region59: #{tpu_custom_call.1} parent=55 // pred_region
          %s821 = sand.u32 %s170, 1
          %s822 = scalar_lea.sflag [#allocation4], %s821
          %s823 = sand.u32 %s170, 1
          %s824 = smul.addr %s823, 8
          %s825 = scalar_lea.vmem [#allocation3], %s824
          %826 = dma.done %s822, 128
        $region60: #{tpu_custom_call.1} parent=55 // pred_fallthru
          _
      $region56: #{tpu_custom_call.1} parent=5 // pred_fallthru
        _
    $region6: #{tpu_custom_call.1} parent=1 // loop_footer
      %s18 = sadd.s32 1, %s14
    $region7: #{tpu_custom_call.1} parent=1 // loop_footer_branch
      %13 = sbr.rel target = $region3
    $region8: #{tpu_custom_call.1} parent=1 // loop_exit
      _
    %827 = vsyncpa [#allocation4], 1
    %s828 = scalar_lea.sflag [#allocation4], 1
    %829 = vsyncpa %s828, 1

</llo_original>
